<compile_context>
chip_gen: v7x
topology: tpu7x:2x2x1
jax: 0.10.0
libtpu: 0.0.40
codegen_flags: <defaults>
</compile_context>

<pallas_src>
import functools

import jax
import jax.numpy as jnp
from jax import lax
from jax.experimental import pallas as pl
from jax.experimental.pallas import tpu as pltpu

_LANES = 128
_TARGET_TILE_BYTES = 4 * 1024 * 1024    # per-input VMEM tile (f32: 8192 lane-rows)
_VMEM_LIMIT_BYTES = 32 * 1024 * 1024    # raise v5e default (16 MiB); == v6e/v7x default


def _round_up(x, m):
    return ((x + m - 1) // m) * m


def _xcorr2_kernel(x1_ref, x2_ref, o_ref, acc_ref, *,
                   zero_mean_normalized, eps, n, total_rows, mask_last, unroll):
    step = pl.program_id(0)
    last = pl.num_programs(0) - 1
    nstats = acc_ref.shape[0]
    block_h, width = x1_ref.shape
    full_slabs = block_h // 8
    rem = block_h - full_slabs * 8          # only nonzero when the grid has 1 block

    @pl.when(step == 0)
    def _init():
        acc_ref[...] = jnp.zeros_like(acc_ref)

    def load_slab(row_start, nrows, valid_rows):
        a = x1_ref[pl.ds(row_start, nrows), :].astype(jnp.float32)
        b = x2_ref[pl.ds(row_start, nrows), :].astype(jnp.float32)
        if valid_rows is not None:
            # Mask rows past the true image extent (garbage in the padded edge
            # block) BEFORE any arithmetic, so NaN/Inf garbage never propagates.
            rid = lax.broadcasted_iota(jnp.int32, (nrows, 1), 0) + row_start
            keep = rid < valid_rows
            a = jnp.where(keep, a, 0.0)
            b = jnp.where(keep, b, 0.0)
        return a, b

    def accum(carry, a, b):
        if zero_mean_normalized:
            p, s1, s2, q1, q2 = carry
            return (p + a * b, s1 + a, s2 + b, q1 + a * a, q2 + b * b)
        (p,) = carry
        return (p + a * b,)

    def accumulate_tile(valid_rows):
        # Register-carried partial sums: all statistics updated in ONE pass over
        # the tile (each x1/x2 vreg loaded exactly once from VMEM).
        carry = tuple(jnp.zeros((8, width), jnp.float32) for _ in range(nstats))
        main_iters = full_slabs // unroll

        def body(i, c):
            base = i * (8 * unroll)
            for u in range(unroll):
                r = pl.multiple_of(base + u * 8, 8)
                a, b = load_slab(r, 8, valid_rows)
                c = accum(c, a, b)
            return c

        if main_iters > 0:
            carry = lax.fori_loop(0, main_iters, body, carry)
        for s in range(main_iters * unroll, full_slabs):      # static leftover slabs
            a, b = load_slab(s * 8, 8, valid_rows)
            carry = accum(carry, a, b)
        if rem:  # trailing partial slab (single-block grids with rows % 8 != 0)
            a, b = load_slab(full_slabs * 8, rem, valid_rows)
            pad = jnp.zeros((8 - rem, width), jnp.float32)
            a = jnp.concatenate([a, pad], axis=0)
            b = jnp.concatenate([b, pad], axis=0)
            carry = accum(carry, a, b)
        for j in range(nstats):
            acc_ref[j] += carry[j]

    if mask_last:
        # Keep the hot blocks mask-free; only the ragged last block pays for masking.
        @pl.when(step != last)
        def _full_blocks():
            accumulate_tile(None)

        @pl.when(step == last)
        def _ragged_tail():
            accumulate_tile(total_rows - step * block_h)
    else:
        accumulate_tile(None)

    @pl.when(step == last)
    def _finalize():
        inv_n = 1.0 / n
        p = jnp.sum(acc_ref[0]) * inv_n
        if zero_mean_normalized:
            # NOTE: single-pass E[x^2]-E[x]^2 can cancel for large-mean images;
            # clamp at 0 so eps keeps the rsqrt finite.
            m1 = jnp.sum(acc_ref[1]) * inv_n
            m2 = jnp.sum(acc_ref[2]) * inv_n
            v1 = jnp.maximum(jnp.sum(acc_ref[3]) * inv_n - m1 * m1, 0.0)
            v2 = jnp.maximum(jnp.sum(acc_ref[4]) * inv_n - m2 * m2, 0.0)
            score = (p - m1 * m2) * lax.rsqrt((v1 + eps) * (v2 + eps))
        else:
            score = p
        o_ref[0, 0] = score


def _input_spec(block_shape, index_map, buffer_count):
    if buffer_count is not None and hasattr(pl, "Buffered"):
        try:
            return pl.BlockSpec(block_shape, index_map,
                                pipeline_mode=pl.Buffered(buffer_count))
        except TypeError:  # older BlockSpec without pipeline_mode
            pass
    return pl.BlockSpec(block_shape, index_map)


@functools.partial(jax.jit, static_argnames=("zero_mean_normalized", "eps"))
def xcorr2(x1, x2, *, zero_mean_normalized=False, eps=1e-5):
    assert x1.shape == x2.shape and x1.ndim == 2
    h, w = x1.shape
    n = h * w

    if n % _LANES == 0:
        # Free row-major reshape (no HBM copy under jit) to a lane-dense layout.
        x1v = x1.reshape(n // _LANES, _LANES)
        x2v = x2.reshape(n // _LANES, _LANES)
    else:
        # Ragged size: zero-copy 2-D tiling of the original array; the kernel
        # masks the ragged last row block.
        x1v, x2v = x1, x2
    rows, width = x1v.shape

    itemsize = jnp.dtype(x1.dtype).itemsize          # bf16 inputs: half the HBM traffic
    padded_w = _round_up(width, _LANES)
    row_bytes = padded_w * itemsize
    max_block_h = max(8, (_TARGET_TILE_BYTES // row_bytes) // 8 * 8)

    if rows <= max_block_h:
        num_blocks, block_h = 1, rows
    else:
        num_blocks = pl.cdiv(rows, max_block_h)
        block_h = _round_up(pl.cdiv(rows, num_blocks), 8)
        num_blocks = pl.cdiv(rows, block_h)
        if num_blocks == 1:
            block_h = rows
    mask_last = num_blocks * block_h != rows
    unroll = max(1, 8 // pl.cdiv(width, _LANES))
    buffer_count = 3 if num_blocks >= 3 else None     # triple-buffer long streams
    nstats = 5 if zero_mean_normalized else 1

    kernel = functools.partial(
        _xcorr2_kernel,
        zero_mean_normalized=zero_mean_normalized,
        eps=float(eps),
        n=float(n),
        total_rows=rows,
        mask_last=mask_last,
        unroll=unroll,
    )

    cost = pl.CostEstimate(
        flops=(10 if zero_mean_normalized else 2) * n,
        transcendentals=1 if zero_mean_normalized else 0,
        bytes_accessed=2 * n * itemsize + 4,
    )

    out = pl.pallas_call(
        kernel,
        out_shape=jax.ShapeDtypeStruct((1, 1), jnp.float32),
        grid_spec=pltpu.PrefetchScalarGridSpec(
            num_scalar_prefetch=0,
            grid=(num_blocks,),
            in_specs=[
                _input_spec((block_h, width), lambda i: (i, 0), buffer_count),
                _input_spec((block_h, width), lambda i: (i, 0), buffer_count),
            ],
            out_specs=pl.BlockSpec(memory_space=pltpu.MemorySpace.SMEM),
            scratch_shapes=[pltpu.VMEM((nstats, 8, width), jnp.float32)],
        ),
        compiler_params=pltpu.CompilerParams(
            dimension_semantics=("arbitrary",),       # single reduction axis
            vmem_limit_bytes=_VMEM_LIMIT_BYTES,
        ),
        cost_estimate=cost,
    )(x1v, x2v)
    return out[0, 0]


def _xcorr2_ref(x1, x2, *, zero_mean_normalized=False, eps=1e-5):
    x1 = x1.astype(jnp.float32)
    x2 = x2.astype(jnp.float32)
    n = x1.size
    if zero_mean_normalized:
        x1 = (x1 - x1.mean()) / jnp.sqrt(x1.var() + eps)
        x2 = (x2 - x2.mean()) / jnp.sqrt(x2.var() + eps)
    return jnp.dot(x1.reshape(n), x2.reshape(n)) / n


if __name__ == "__main__":
    key = jax.random.PRNGKey(0)
    k1, k2, k3, k4, k5, k6 = jax.random.split(key, 6)

    # 1) Small image pair matching the module's 2-D (H, W) inputs.
    #    (n = 256 -> lane-dense reshape, single block, partial-slab path.)
    H, W = 16, 16
    x1 = jax.random.normal(k1, (H, W), dtype=jnp.float32)
    x2 = jax.random.normal(k2, (H, W), dtype=jnp.float32)
    s_plain = xcorr2(x1, x2, zero_mean_normalized=False)   # module default
    s_zmn = xcorr2(x1, x2, zero_mean_normalized=True)
    jax.block_until_ready((s_plain, s_zmn))
    assert jnp.allclose(s_plain, _xcorr2_ref(x1, x2), atol=1e-4, rtol=1e-4)
    assert jnp.allclose(s_zmn, _xcorr2_ref(x1, x2, zero_mean_normalized=True),
                        atol=1e-4, rtol=1e-4)

    # 2) 128-aligned size: lane-dense reshape path, single big tile, fori_loop slabs.
    Ha, Wa = 384, 512
    a1 = jax.random.normal(k3, (Ha, Wa), dtype=jnp.float32)
    a2 = jax.random.normal(k4, (Ha, Wa), dtype=jnp.float32)
    sa_plain = xcorr2(a1, a2, zero_mean_normalized=False)
    sa_zmn = xcorr2(a1, a2, zero_mean_normalized=True)
    jax.block_until_ready((sa_plain, sa_zmn))
    assert jnp.allclose(sa_plain, _xcorr2_ref(a1, a2), atol=1e-4, rtol=1e-4)
    assert jnp.allclose(sa_zmn, _xcorr2_ref(a1, a2, zero_mean_normalized=True),
                        atol=1e-4, rtol=1e-4)

    # 3) Non-128-aligned size: zero-copy (H, W) tiling, 3-step grid, triple
    #    buffering, masked ragged last block.
    Hb, Wb = 9001, 200
    b1 = jax.random.normal(k5, (Hb, Wb), dtype=jnp.float32)
    b2 = jax.random.normal(k6, (Hb, Wb), dtype=jnp.float32)
    sb_plain = xcorr2(b1, b2, zero_mean_normalized=False)
    sb_zmn = xcorr2(b1, b2, zero_mean_normalized=True)
    jax.block_until_ready((sb_plain, sb_zmn))
    assert jnp.allclose(sb_plain, _xcorr2_ref(b1, b2), atol=1e-4, rtol=1e-4)
    assert jnp.allclose(sb_zmn, _xcorr2_ref(b1, b2, zero_mean_normalized=True),
                        atol=1e-4, rtol=1e-4)

    # 4) bf16 inputs (halves HBM traffic; kernel accumulates in f32).
    x1b = x1.astype(jnp.bfloat16)
    x2b = x2.astype(jnp.bfloat16)
    s_bf16 = xcorr2(x1b, x2b, zero_mean_normalized=False)
    jax.block_until_ready(s_bf16)
    assert jnp.allclose(s_bf16, _xcorr2_ref(x1b, x2b), atol=1e-4, rtol=1e-4)

    print("KERNEL_OK")
</pallas_src>

<mosaic_0001>
module attributes {stable_mosaic.version = 11 : i64} {
  func.func @_xcorr2_kernel(%arg0: i32, %arg1: memref<2x128xf32, #tpu.memory_space<vmem>>, %arg2: memref<2x128xf32, #tpu.memory_space<vmem>>, %arg3: memref<1x1xf32, #tpu.memory_space<smem>>, %arg4: memref<1x8x128xf32, #tpu.memory_space<vmem>>) attributes {dimension_semantics = [#tpu.dimension_semantics<arbitrary>], iteration_bounds = array<i64: 1>, scalar_prefetch = 0 : i64, scratch_operands = 1 : i64, tpu.core_type = #tpu.core_type<tc>, window_params = [{transform_indices = @transform_0, window_bounds = array<i64: 2, 128>}, {transform_indices = @transform_1, window_bounds = array<i64: 2, 128>}, {transform_indices = @transform_2, window_bounds = array<i64: 1, 1>}]} {
    %c0_i32 = arith.constant 0 : i32
    %0 = arith.cmpi eq, %arg0, %c0_i32 : i32
    %1 = arith.extui %0 : i1 to i32
    %c0_i32_0 = arith.constant 0 : i32
    %2 = arith.cmpi ne, %1, %c0_i32_0 : i32
    scf.if %2 {
      %cst_13 = arith.constant 0.000000e+00 : f32
      %20 = vector.broadcast %cst_13 : f32 to vector<1x8x128xf32>
      %c0_14 = arith.constant 0 : index
      %c0_15 = arith.constant 0 : index
      %c0_16 = arith.constant 0 : index
      %21 = vector.load %arg4[%c0_14, %c0_15, %c0_16] : memref<1x8x128xf32, #tpu.memory_space<vmem>>, vector<1x8x128xf32>
      tpu.vector_store %arg4[%c0_14, %c0_15, %c0_16], %20 {strides = array<i32>} : memref<1x8x128xf32, #tpu.memory_space<vmem>>, vector<1x8x128xf32>,
    } else {
    }
    %cst = arith.constant 0.000000e+00 : f32
    %3 = vector.broadcast %cst : f32 to vector<8x128xf32>
    %c0 = arith.constant 0 : index
    %c0_1 = arith.constant 0 : index
    %4 = vector.load %arg1[%c0, %c0_1] : memref<2x128xf32, #tpu.memory_space<vmem>>, vector<2x128xf32>
    %c0_2 = arith.constant 0 : index
    %c0_3 = arith.constant 0 : index
    %5 = vector.load %arg2[%c0_2, %c0_3] : memref<2x128xf32, #tpu.memory_space<vmem>>, vector<2x128xf32>
    %cst_4 = arith.constant 0.000000e+00 : f32
    %6 = vector.broadcast %cst_4 : f32 to vector<6x128xf32>
    %7 = tpu.concatenate %4, %6 in 0 : vector<2x128xf32>, vector<6x128xf32> -> vector<8x128xf32>
    %8 = tpu.concatenate %5, %6 in 0 : vector<2x128xf32>, vector<6x128xf32> -> vector<8x128xf32>
    %9 = arith.mulf %7, %8 : vector<8x128xf32>
    %10 = arith.addf %3, %9 : vector<8x128xf32>
    %c0_5 = arith.constant 0 : index
    %c0_6 = arith.constant 0 : index
    %c0_7 = arith.constant 0 : index
    %11 = vector.load %arg4[%c0_5, %c0_6, %c0_7] : memref<1x8x128xf32, #tpu.memory_space<vmem>>, vector<1x8x128xf32>
    %12 = vector.shape_cast %11 : vector<1x8x128xf32> to vector<8x128xf32>
    %13 = arith.addf %12, %10 : vector<8x128xf32>
    %c0_8 = arith.constant 0 : index
    %c0_9 = arith.constant 0 : index
    %c0_10 = arith.constant 0 : index
    %14 = vector.load %arg4[%c0_8, %c0_9, %c0_10] : memref<1x8x128xf32, #tpu.memory_space<vmem>>, vector<1x8x128xf32>
    %15 = vector.shape_cast %14 : vector<1x8x128xf32> to vector<8x128xf32>
    %16 = vector.shape_cast %13 : vector<8x128xf32> to vector<1x8x128xf32>
    tpu.vector_store %arg4[%c0_8, %c0_9, %c0_10], %16 {strides = array<i32>} : memref<1x8x128xf32, #tpu.memory_space<vmem>>, vector<1x8x128xf32>,
    %c0_i32_11 = arith.constant 0 : i32
    %17 = arith.cmpi eq, %arg0, %c0_i32_11 : i32
    %18 = arith.extui %17 : i1 to i32
    %c0_i32_12 = arith.constant 0 : i32
    %19 = arith.cmpi ne, %18, %c0_i32_12 : i32
    scf.if %19 {
      %c0_13 = arith.constant 0 : index
      %c0_14 = arith.constant 0 : index
      %c0_15 = arith.constant 0 : index
      %20 = vector.load %arg4[%c0_13, %c0_14, %c0_15] : memref<1x8x128xf32, #tpu.memory_space<vmem>>, vector<1x8x128xf32>
      %21 = vector.shape_cast %20 : vector<1x8x128xf32> to vector<8x128xf32>
      %22 = vector.shape_cast %21 : vector<8x128xf32> to vector<1x8x128xf32>
      %cst_16 = arith.constant dense<0.000000e+00> : vector<1xf32>
      %23 = vector.multi_reduction <add>, %22, %cst_16 [1, 2] : vector<1x8x128xf32> to vector<1xf32>
      %24 = vector.shape_cast %23 : vector<1xf32> to vector<1x1x1xf32>
      %25 = vector.extract %24[0, 0, 0] : f32 from vector<1x1x1xf32>
      %cst_17 = arith.constant 3.906250e-03 : f32
      %26 = arith.mulf %25, %cst_17 : f32
      %c0_18 = arith.constant 0 : index
      %c0_19 = arith.constant 0 : index
      %27 = memref.load %arg3[%c0_18, %c0_19] : memref<1x1xf32, #tpu.memory_space<smem>>
      memref.store %26, %arg3[%c0_18, %c0_19] : memref<1x1xf32, #tpu.memory_space<smem>>
    } else {
    }
    return
  }
  func.func @transform_0(%arg0: i32) -> (i32, i32) {
    %c0_i32 = arith.constant 0 : i32
    %c0_i32_0 = arith.constant 0 : i32
    return %arg0, %c0_i32 : i32, i32
  }
  func.func @transform_1(%arg0: i32) -> (i32, i32) {
    %c0_i32 = arith.constant 0 : i32
    %c0_i32_0 = arith.constant 0 : i32
    return %arg0, %c0_i32 : i32, i32
  }
  func.func @transform_2(%arg0: i32) -> (i32, i32) {
    %c0_i32 = arith.constant 0 : i32
    %c0_i32_0 = arith.constant 0 : i32
    %c0_i32_1 = arith.constant 0 : i32
    return %c0_i32, %c0_i32_0 : i32, i32
  }
}

</mosaic_0001>

<llo_original>
// kernel: xcorr2.1
$region0: #{xcorr2.1}
  #allocation0 [shape = 'u32[]', space=smem, size = 0x4, offset = 0x4, fixed_abs, tag = 'smem constant byte address 0x4 - core index']
  #allocation1 [shape = 'u32[144,128]{1,0:T(1,128)}', space=vmem, size = 0x12000, scoped, tag = 'internal scratch']
  #allocation2 [shape = 'f32[1,8,128]{2,1,0:T(8,128)}', space=vmem, size = 0x1000, scoped, tag = 'scratch operand']
  %s0 = inlined_call_operand.vmem [shape: f32[2,128], index: 0, kind: input, shape index: {}]
  %s1 = inlined_call_operand.vmem [shape: f32[2,128], index: 1, kind: input, shape index: {}]
  %s2 = inlined_call_operand.hbm [shape: f32[1,1], index: 2, kind: output, shape index: {}]
  %s3 = sld [smem:[#allocation0]]
  $region26: #{xcorr2.1} parent=0
    _
  %s5 = ssub.s32 1, %s3
  %s6 = scalar_select 0, %s5, %s3
  $region1: #{xcorr2.1} parent=0
    #allocation3 [shape = 'u8[512]{0}', space=smem, size = 0x200, scoped, tag = 'output window, operand 0, single buffered']
    #allocation4 [shape = 's32[1]{0}', space=sflag, size = 0x4, scoped, tag = 'scoped memory for xcorr2.1']
    %7 = vsyncpa [#allocation4], 0
    // Predicated region
    $region2: #{xcorr2.1} parent=1 // pred_check
      _
    $region3: #{xcorr2.1} parent=1 // pred_check_branch
      %9 = sbr.rel (0) target = $region5
    $region4: #{xcorr2.1} parent=1 // pred_region
      _
    $region5: #{xcorr2.1} parent=1 // pred_fallthru
      _
    // Predicated region
    $region6: #{xcorr2.1} parent=1 // pred_check
      _
    $region7: #{xcorr2.1} parent=1 // pred_check_branch
      %11 = sbr.rel (0) target = $region9
    $region8: #{xcorr2.1} parent=1 // pred_region
      _
    $region9: #{xcorr2.1} parent=1 // pred_fallthru
      _
    %p12 = scmp.eq.s32.totalorder 0, 0
    // Predicated region
    $region10: #{xcorr2.1} parent=1 // pred_check
      %p13 = pneg %p12
    $region11: #{xcorr2.1} parent=1 // pred_check_branch
      %15 = sbr.rel (%p13) target = $region13
    $region12: #{xcorr2.1} parent=1 // pred_region
      %16 = vst [vmem:[#allocation2] sm:$0xff] 0.0
    $region13: #{xcorr2.1} parent=1 // pred_fallthru
      _
    %v17 = vld [vmem:[%s0] sm:$0x3]
    %v18 = vld [vmem:[%s1] sm:$0x3]
    %vm19 = vcmask 1041408
    %v20 = vsel %vm19, %v17, 0.0
    %v21 = vsel %vm19, %v18, 0.0
    %v22 = vmul.f32 %v20, %v21
    %v23 = vadd.f32 %v22, 0.0
    %v24 = vld [vmem:[#allocation2] sm:$0xff]
    %v25 = vadd.f32 %v24, %v23
    %26 = vst [vmem:[#allocation2] sm:$0xff] %v25
    // Predicated region
    $region14: #{xcorr2.1} parent=1 // pred_check
      %p27 = pneg %p12
    $region15: #{xcorr2.1} parent=1 // pred_check_branch
      %29 = sbr.rel (%p27) target = $region17
    $region16: #{xcorr2.1} parent=1 // pred_region
      %v30 = vld [vmem:[#allocation2] sm:$0xff]
      %31 = vadd.xlane.f32.xlu0 %v30
      %v32 = vpop.xlane.xlu0 %31
      %v33 = vrot.slane %v32, 4
      %v34 = vadd.f32 %v32, %v33
      %v35 = vrot.slane %v34, 2
      %v36 = vadd.f32 %v34, %v35
      %v37 = vrot.slane %v36, 1
      %v38 = vadd.f32 %v36, %v37
      %s39 = vtos %v38
      %s40 = smul.f32 %s39, 0.00390625
      %s41 = scalar_lea.smem [#allocation3], 0
      %42 = sst [smem:[%s41]] %s40
    $region17: #{xcorr2.1} parent=1 // pred_fallthru
      _
    // Predicated region
    $region18: #{xcorr2.1} parent=1 // pred_check
      _
    $region19: #{xcorr2.1} parent=1 // pred_check_branch
      %44 = sbr.rel (0) target = $region21
    $region20: #{xcorr2.1} parent=1 // pred_region
      %s46 = ssub.s32 16, 16
      %47 = vsyncadd [#allocation4], %s46
      %50 = dma.smem_to_hbm [#allocation3], 16, %s2, [#allocation4]
    $region21: #{xcorr2.1} parent=1 // pred_fallthru
      _
    // Predicated region
    $region22: #{xcorr2.1} parent=1 // pred_check
      _
    $region23: #{xcorr2.1} parent=1 // pred_check_branch
      %52 = sbr.rel (0) target = $region25
    $region24: #{xcorr2.1} parent=1 // pred_region
      %53 = dma.done [#allocation4], 16
    $region25: #{xcorr2.1} parent=1 // pred_fallthru
      _
    %54 = sfence
    %55 = vsyncpa [#allocation4], 1

</llo_original>
